<compile_context>
chip_gen: v6e
topology: v6e:2x2x1
jax: 0.10.0
libtpu: 0.0.40
codegen_flags: <defaults>
</compile_context>

<pallas_src>
import jax
import jax.numpy as jnp
from jax import lax
from jax.experimental import pallas as pl
from jax.experimental.pallas import tpu as pltpu


def _make_kernel(C, R, K, W_orig, swap, mxu_dtype):
    def kernel(flow_ref, src_ref, out_ref):
        # flow_ref: (1, 2, P)    flow tile; row0 = displacement along H, row1 = along W
        # src_ref : (1, C*R, K)  whole source image, channels folded into rows,
        #                        resident in VMEM across the pixel-tile axis
        # out_ref : (1, C, P)
        P = out_ref.shape[2]

        # Identity grid rebuilt in-kernel from the flat pixel index.  idx enumerates
        # pixels of the ORIGINAL (H, W) row-major image; padded tail pixels get
        # out-of-range coords -> zero weights -> zero output (sliced off).
        idx = pl.program_id(1) * P + lax.broadcasted_iota(jnp.int32, (1, P), 1)
        idx_f = idx.astype(jnp.float32)
        gy = jnp.floor((idx_f + 0.5) / jnp.float32(W_orig))   # original row index
        gx = idx_f - gy * jnp.float32(W_orig)                  # original col index

        # Sampling coordinates in pixel units (align_corners=True: the module's
        # normalize -> un-normalize round trip cancels algebraically).
        fl = flow_ref[0].astype(jnp.float32)                   # (2, P)
        y = gy + fl[0:1, :]                                    # coord along H
        x = gx + fl[1:2, :]                                    # coord along W
        cK, cR = (y, x) if swap else (x, y)

        # Bilinear "tent" weights: w = max(0, 1 - |index - coord|).  At most two
        # non-zeros per pixel; out-of-bounds corners get weight 0 (zeros padding).
        kk = lax.broadcasted_iota(jnp.int32, (K, P), 0).astype(jnp.float32)
        wK = jnp.maximum(0.0, 1.0 - jnp.abs(kk - cK))          # (K, P) f32
        rr = lax.broadcasted_iota(jnp.int32, (R, P), 0).astype(jnp.float32)
        wR = jnp.maximum(0.0, 1.0 - jnp.abs(rr - cR))          # (R, P) f32

        # Column gather + K-interpolation on the MXU:
        #   v[(c,r), p] = sum_k src[(c,r), k] * wK[k, p]
        v = jnp.dot(src_ref[0], wK.astype(mxu_dtype),
                    preferred_element_type=jnp.float32)        # (C*R, P) f32

        # Row gather + R-interpolation: one fused VPU multiply + sublane reduce.
        out = jnp.sum(v.reshape(C, R, P) * wR[None, :, :], axis=1)   # (C, P)
        out_ref[...] = out.reshape(1, C, P).astype(out_ref.dtype)

    return kernel


def spatial_transformer(src, flow, *, tile_p=None, mxu_precision="auto"):
    """Pallas equivalent of SpatialTransformer((H, W), mode='bilinear').forward.

    mxu_precision:
      "auto"    - keep src dtype on the MXU (bf16 stays bf16, f32 stays f32)
      "bf16"    - cast src + column weights to bf16 (f32 accumulation): ~4-8x
                  faster matmul on all TPU generations, ~0.4% weight error
      "float32" - force the f32 (multi-pass) MXU path
    """
    N, C, H, W = src.shape
    assert flow.shape == (N, 2, H, W)

    # Shape-driven MXU contraction dim: contract the LARGER spatial dim on the
    # MXU (better fill of the 128/256-wide native contraction), reduce the other
    # on the VPU.
    swap = H > W
    if swap:
        src_k = src.transpose(0, 1, 3, 2).reshape(N, C * W, H)   # R=W, K=H
        R, K = W, H
    else:
        src_k = src.reshape(N, C * H, W)                          # R=H, K=W
        R, K = H, W

    if mxu_precision == "bf16":
        mxu_dtype = jnp.bfloat16
    elif mxu_precision == "auto":
        mxu_dtype = src.dtype if src.dtype in (jnp.bfloat16, jnp.float16) else jnp.float32
    else:
        mxu_dtype = jnp.float32
    src_k = src_k.astype(mxu_dtype)   # cast once in HBM (halves src DMA when bf16)

    HW = H * W
    if tile_p is None:
        # Big tiles amortize per-grid-step overhead and fill the 256-wide MXU
        # output dim on v6e/v7x; cap so the f32 (C*R, tile_p) intermediate stays
        # a few MiB (safe within v7x's 64 MiB physical VMEM).
        tile_p = max(128, min(512, pl.cdiv(HW, 128) * 128))
        cap = max(128, (((8 * 1024 * 1024) // (4 * C * R)) // 128) * 128)
        tile_p = min(tile_p, cap)
    assert tile_p % 128 == 0, "tile_p must be a multiple of 128 (lane width)"

    HW_pad = pl.cdiv(HW, tile_p) * tile_p
    num_tiles = HW_pad // tile_p

    flow_flat = flow.reshape(N, 2, HW)
    if HW_pad != HW:
        flow_flat = jnp.pad(flow_flat, ((0, 0), (0, 0), (0, HW_pad - HW)))

    itemsize = jnp.dtype(mxu_dtype).itemsize
    flops = N * num_tiles * (2 * C * R * K * tile_p        # MXU gather matmul
                             + 4 * (R + K) * tile_p        # tent weight build
                             + 2 * C * R * tile_p)         # VPU row reduce
    bytes_accessed = int(N * C * R * K * itemsize
                         + flow_flat.size * flow_flat.dtype.itemsize
                         + N * C * HW_pad * src.dtype.itemsize)

    # Working-set-derived VMEM limit: above v5e's 16 MiB scoped default, below
    # v7x's 64 MiB physical capacity.
    working = (2 * C * R * K * itemsize                    # double-buffered resident src
               + 2 * 2 * tile_p * flow_flat.dtype.itemsize * 2
               + 2 * C * tile_p * src.dtype.itemsize
               + C * R * tile_p * 4                        # f32 matmul result
               + (R + K) * tile_p * 4)                     # weights
    vmem_limit = int(min(48 * 1024 * 1024, max(32 * 1024 * 1024, 2 * working)))

    kernel = _make_kernel(C, R, K, W, swap, mxu_dtype)

    out_flat = pl.pallas_call(
        kernel,
        out_shape=jax.ShapeDtypeStruct((N, C, HW_pad), src.dtype),
        grid_spec=pltpu.PrefetchScalarGridSpec(
            num_scalar_prefetch=0,
            grid=(N, num_tiles),
            in_specs=[
                pl.BlockSpec((1, 2, tile_p), lambda n, p: (n, 0, p)),   # flow tile
                pl.BlockSpec((1, C * R, K), lambda n, p: (n, 0, 0)),    # full src (resident over p)
            ],
            out_specs=pl.BlockSpec((1, C, tile_p), lambda n, p: (n, 0, p)),
        ),
        compiler_params=pltpu.CompilerParams(
            dimension_semantics=("parallel", "parallel"),
            vmem_limit_bytes=vmem_limit),
        cost_estimate=pl.CostEstimate(
            flops=int(flops), transcendentals=0, bytes_accessed=bytes_accessed),
    )(flow_flat, src_k)

    return out_flat[:, :, :HW].reshape(N, C, H, W)


def _reference(src, flow):
    """Pure-JAX reference of grid_sample(bilinear, align_corners=True, zeros),
    including the PyTorch module's normalize round-trip for FP fidelity."""
    N, C, H, W = src.shape
    gy = jnp.arange(H, dtype=jnp.float32)[:, None]
    gx = jnp.arange(W, dtype=jnp.float32)[None, :]
    y = gy + flow[:, 0]
    x = gx + flow[:, 1]
    y = ((2.0 * (y / (H - 1) - 0.5)) + 1.0) * 0.5 * (H - 1)
    x = ((2.0 * (x / (W - 1) - 0.5)) + 1.0) * 0.5 * (W - 1)
    y0 = jnp.floor(y)
    x0 = jnp.floor(x)
    out = jnp.zeros_like(src)
    for dy, wy in ((0, 1.0 - (y - y0)), (1, y - y0)):
        for dx, wx in ((0, 1.0 - (x - x0)), (1, x - x0)):
            yi = y0 + dy
            xi = x0 + dx
            valid = (yi >= 0) & (yi <= H - 1) & (xi >= 0) & (xi <= W - 1)
            w = (wy * wx) * valid.astype(jnp.float32)
            yic = jnp.clip(yi, 0, H - 1).astype(jnp.int32)
            xic = jnp.clip(xi, 0, W - 1).astype(jnp.int32)
            gathered = jax.vmap(lambda s, yy, xx: s[:, yy, xx])(src, yic, xic)
            out = out + gathered * w[:, None]
    return out


if __name__ == "__main__":
    key = jax.random.PRNGKey(0)
    k_src, k_flow = jax.random.split(key)

    # Test 1: square image, default f32 MXU path.
    N, C, H, W = 2, 4, 16, 16
    src = jax.random.normal(k_src, (N, C, H, W), dtype=jnp.float32)
    # flows of a few pixels, some pushing samples out of bounds (zero padding)
    flow = 3.0 * jax.random.normal(k_flow, (N, 2, H, W), dtype=jnp.float32)
    out = jax.block_until_ready(spatial_transformer(src, flow))
    ref = _reference(src, flow)
    assert out.shape == (N, C, H, W)
    assert jnp.allclose(out, ref, atol=1e-4, rtol=1e-4), (
        float(jnp.max(jnp.abs(out - ref))))

    # Test 2: H > W exercises the shape-driven "contract H on the MXU" path.
    N2, C2, H2, W2 = 1, 3, 24, 16
    k2a, k2b = jax.random.split(jax.random.PRNGKey(1))
    src2 = jax.random.normal(k2a, (N2, C2, H2, W2), dtype=jnp.float32)
    flow2 = 2.0 * jax.random.normal(k2b, (N2, 2, H2, W2), dtype=jnp.float32)
    out2 = jax.block_until_ready(spatial_transformer(src2, flow2))
    ref2 = _reference(src2, flow2)
    assert jnp.allclose(out2, ref2, atol=1e-4, rtol=1e-4), (
        float(jnp.max(jnp.abs(out2 - ref2))))

    # Test 3: fast bf16 MXU path (f32 accumulation), looser tolerance.
    out3 = jax.block_until_ready(spatial_transformer(src, flow, mxu_precision="bf16"))
    assert jnp.allclose(out3, ref, atol=5e-2, rtol=5e-2), (
        float(jnp.max(jnp.abs(out3 - ref))))

    print("KERNEL_OK")
</pallas_src>

<mosaic_0001>
module attributes {stable_mosaic.version = 11 : i64} {
  func.func @kernel(%arg0: i32, %arg1: i32, %arg2: memref<1x2x256xf32, #tpu.memory_space<vmem>>, %arg3: memref<1x64x16xf32, #tpu.memory_space<vmem>>, %arg4: memref<1x4x256xf32, #tpu.memory_space<vmem>>) attributes {dimension_semantics = [#tpu.dimension_semantics<parallel>, #tpu.dimension_semantics<parallel>], iteration_bounds = array<i64: 2, 1>, scalar_prefetch = 0 : i64, scratch_operands = 0 : i64, tpu.core_type = #tpu.core_type<tc>, window_params = [{transform_indices = @transform_0, window_bounds = array<i64: 1, 2, 256>}, {transform_indices = @transform_1, window_bounds = array<i64: 1, 64, 16>}, {transform_indices = @transform_2, window_bounds = array<i64: 1, 4, 256>}]} {
    %c256_i32 = arith.constant 256 : i32
    %0 = arith.muli %arg1, %c256_i32 : i32
    %1 = tpu.iota {dimensions = array<i32: 1>} : vector<1x256xi32>
    %2 = vector.broadcast %0 : i32 to vector<1x256xi32>
    %3 = arith.addi %2, %1 : vector<1x256xi32>
    %4 = arith.sitofp %3 : vector<1x256xi32> to vector<1x256xf32>
    %cst = arith.constant 5.000000e-01 : f32
    %5 = vector.broadcast %cst : f32 to vector<1x256xf32>
    %6 = arith.addf %4, %5 : vector<1x256xf32>
    %cst_0 = arith.constant 1.600000e+01 : f32
    %7 = vector.broadcast %cst_0 : f32 to vector<1x256xf32>
    %8 = arith.divf %6, %7 : vector<1x256xf32>
    %9 = math.floor %8 : vector<1x256xf32>
    %cst_1 = arith.constant 1.600000e+01 : f32
    %10 = vector.broadcast %cst_1 : f32 to vector<1x256xf32>
    %11 = arith.mulf %9, %10 : vector<1x256xf32>
    %12 = arith.subf %4, %11 : vector<1x256xf32>
    %c0 = arith.constant 0 : index
    %c0_2 = arith.constant 0 : index
    %c0_3 = arith.constant 0 : index
    %13 = vector.load %arg2[%c0, %c0_2, %c0_3] : memref<1x2x256xf32, #tpu.memory_space<vmem>>, vector<1x2x256xf32>
    %14 = vector.shape_cast %13 : vector<1x2x256xf32> to vector<2x256xf32>
    %15 = vector.extract_strided_slice %14 {offsets = [0, 0], sizes = [1, 256], strides = [1, 1]} : vector<2x256xf32> to vector<1x256xf32>
    %16 = arith.addf %9, %15 : vector<1x256xf32>
    %17 = vector.extract_strided_slice %14 {offsets = [1, 0], sizes = [1, 256], strides = [1, 1]} : vector<2x256xf32> to vector<1x256xf32>
    %18 = arith.addf %12, %17 : vector<1x256xf32>
    %19 = tpu.iota {dimensions = array<i32: 0>} : vector<16x256xi32>
    %20 = arith.sitofp %19 : vector<16x256xi32> to vector<16x256xf32>
    %21 = vector.broadcast %18 : vector<1x256xf32> to vector<16x256xf32>
    %22 = arith.subf %20, %21 : vector<16x256xf32>
    %23 = math.absf %22 : vector<16x256xf32>
    %cst_4 = arith.constant 1.000000e+00 : f32
    %24 = vector.broadcast %cst_4 : f32 to vector<16x256xf32>
    %25 = arith.subf %24, %23 : vector<16x256xf32>
    %cst_5 = arith.constant 0.000000e+00 : f32
    %26 = vector.broadcast %cst_5 : f32 to vector<16x256xf32>
    %27 = arith.maximumf %26, %25 : vector<16x256xf32>
    %28 = tpu.iota {dimensions = array<i32: 0>} : vector<16x256xi32>
    %29 = arith.sitofp %28 : vector<16x256xi32> to vector<16x256xf32>
    %30 = vector.broadcast %16 : vector<1x256xf32> to vector<16x256xf32>
    %31 = arith.subf %29, %30 : vector<16x256xf32>
    %32 = math.absf %31 : vector<16x256xf32>
    %cst_6 = arith.constant 1.000000e+00 : f32
    %33 = vector.broadcast %cst_6 : f32 to vector<16x256xf32>
    %34 = arith.subf %33, %32 : vector<16x256xf32>
    %cst_7 = arith.constant 0.000000e+00 : f32
    %35 = vector.broadcast %cst_7 : f32 to vector<16x256xf32>
    %36 = arith.maximumf %35, %34 : vector<16x256xf32>
    %c0_8 = arith.constant 0 : index
    %c0_9 = arith.constant 0 : index
    %c0_10 = arith.constant 0 : index
    %37 = vector.load %arg3[%c0_8, %c0_9, %c0_10] : memref<1x64x16xf32, #tpu.memory_space<vmem>>, vector<1x64x16xf32>
    %38 = vector.shape_cast %37 : vector<1x64x16xf32> to vector<64x16xf32>
    %cst_11 = arith.constant dense<0.000000e+00> : vector<64x256xf32>
    %39 = tpu.matmul %38, %27, %cst_11 {dimension_numbers = #tpu.dot_dimension_numbers<[1], [0], [0], [1], [0, 0, 1, 1], [], []>} : vector<64x16xf32>, vector<16x256xf32>, vector<64x256xf32> -> vector<64x256xf32>
    %40 = vector.shape_cast %39 : vector<64x256xf32> to vector<4x16x256xf32>
    %41 = vector.shape_cast %36 : vector<16x256xf32> to vector<1x16x256xf32>
    %42 = vector.broadcast %41 : vector<1x16x256xf32> to vector<4x16x256xf32>
    %43 = arith.mulf %40, %42 : vector<4x16x256xf32>
    %cst_12 = arith.constant dense<0.000000e+00> : vector<4x256xf32>
    %44 = vector.multi_reduction <add>, %43, %cst_12 [1] : vector<4x16x256xf32> to vector<4x256xf32>
    %45 = vector.shape_cast %44 : vector<4x256xf32> to vector<1x4x256xf32>
    %c0_13 = arith.constant 0 : index
    %c0_14 = arith.constant 0 : index
    %c0_15 = arith.constant 0 : index
    %46 = vector.load %arg4[%c0_13, %c0_14, %c0_15] : memref<1x4x256xf32, #tpu.memory_space<vmem>>, vector<1x4x256xf32>
    tpu.vector_store %arg4[%c0_13, %c0_14, %c0_15], %45 {strides = array<i32>} : memref<1x4x256xf32, #tpu.memory_space<vmem>>, vector<1x4x256xf32>,
    return
  }
  func.func @transform_0(%arg0: i32, %arg1: i32) -> (i32, i32, i32) {
    %c0_i32 = arith.constant 0 : i32
    %c0_i32_0 = arith.constant 0 : i32
    return %arg0, %c0_i32, %arg1 : i32, i32, i32
  }
  func.func @transform_1(%arg0: i32, %arg1: i32) -> (i32, i32, i32) {
    %c0_i32 = arith.constant 0 : i32
    %c0_i32_0 = arith.constant 0 : i32
    %c0_i32_1 = arith.constant 0 : i32
    return %arg0, %c0_i32, %c0_i32_0 : i32, i32, i32
  }
  func.func @transform_2(%arg0: i32, %arg1: i32) -> (i32, i32, i32) {
    %c0_i32 = arith.constant 0 : i32
    %c0_i32_0 = arith.constant 0 : i32
    return %arg0, %c0_i32, %arg1 : i32, i32, i32
  }
}

</mosaic_0001>

<llo_original>
// kernel: tpu_custom_call.1
$region0: #{tpu_custom_call.1}
  #allocation0 [shape = 'u32[]', space=smem, size = 0x4, offset = 0x4, fixed_abs, tag = 'smem constant byte address 0x4 - core index']
  #allocation1 [shape = 'u32[144,128]{1,0:T(1,128)}', space=vmem, size = 0x12000, scoped, tag = 'internal scratch']
  %s0 = inlined_call_operand.vmem [shape: f32[2,2,256], index: 0, kind: input, shape index: {}]
  %s1 = inlined_call_operand.vmem [shape: f32[2,64,16], index: 1, kind: input, shape index: {}]
  %s2 = inlined_call_operand.hbm [shape: f32[2,4,256], index: 2, kind: output, shape index: {}]
  %s3 = sld [smem:[#allocation0]]
  $region41: #{tpu_custom_call.1} parent=0
    _
  %s5 = ssub.s32 1, %s3
  %s6 = scalar_select 0, %s5, %s3
  $region1: #{tpu_custom_call.1} parent=0
    #allocation2 [shape = 'u8[8192]{0}', space=vmem, size = 0x2000, scoped, tag = 'output window, operand 0']
    #allocation3 [shape = 's32[2]{0}', space=sflag, size = 0x8, scoped, tag = 'scoped memory for tpu_custom_call.1']
    %7 = vsyncpa [#allocation3], 0
    %s8 = scalar_lea.sflag [#allocation3], 1
    %9 = vsyncpa %s8, 0
    loop: start=0, step=1, limit=4
    $region2: #{tpu_custom_call.1} parent=1 // loop_pre_header
      _
    $region3: #{tpu_custom_call.1} parent=1 // loop_header
      %s11 = sphi 0, %s15
      %p12 = scmp.ge.s32.totalorder %s11, 4
      %s18 = sphi 0, %s30
      %s19 = sphi 0, %s26
      %s20 = sphi 0, %s18
      %s21 = sphi 0, %s19
      %s22 = sphi 0, %s20
      %s23 = sphi 0, %s21
      %s35 = sphi 0, %s37
      %s38 = sphi 0, %s35
      %s39 = sphi 0, %s38
      %s55 = sphi 0, %s39
      %s61 = sphi 0, %s63
      %s64 = sphi 0, %s61
      %s65 = sphi 0, %s64
      %s81 = sphi 0, %s65
      %s89 = sphi 0, %s91
      %s92 = sphi 0, %s89
      %s93 = sphi 0, %s92
      %s109 = sphi 0, %s93
    $region4: #{tpu_custom_call.1} parent=1 // loop_header_branch
      %14 = sbr.rel (%p12) target = $region8
    $region5: #{tpu_custom_call.1} parent=1 // loop_body
      %s16 = ssub.s32 %s11, 1
      %s17 = ssub.s32 %s11, 2
      %s24 = sadd.s32 1, %s19
      %p25 = scmp.ge.s32.totalorder %s24, 1
      %s26 = scalar_select %p25, 0, %s24
      %s27 = sadd.s32 1, %s18
      %s28 = scalar_select %p25, %s27, %s18
      %p29 = scmp.ge.s32.totalorder %s28, 2
      %s30 = scalar_select %p29, 0, %s28
      %s31 = ssub.s32 %s18, %s30
      %s32 = ssub.s32 %s19, %s26
      %s33 = sor.u32 %s31, %s32
      %p34 = scmp.eq.s32.totalorder %s33, 0
      %s36 = sadd.s32 %s35, 1
      %s37 = scalar_select %p34, %s35, %s36
      %p40 = pneg %p34
      %p41 = scmp.eq.s32.totalorder %s11, 1
      %p42 = por %p40, %p41
      %p43 = scmp.ne.s32.totalorder %s35, %s38
      %p44 = scmp.eq.s32.totalorder %s11, 0
      %p45 = por %p43, %p44
      %p46 = scmp.ne.s32.totalorder %s35, %s38
      %p47 = scmp.eq.s32.totalorder %s16, 1
      %p48 = por %p46, %p47
      %p49 = scmp.ne.s32.totalorder %s38, %s39
      %p50 = scmp.eq.s32.totalorder %s16, 0
      %p51 = por %p49, %p50
      %p52 = scmp.ne.s32.totalorder %s38, %s39
      %p53 = scmp.eq.s32.totalorder %s17, 1
      %p54 = por %p52, %p53
      %p56 = scmp.ne.s32.totalorder %s39, %s55
      %p57 = scmp.eq.s32.totalorder %s17, 0
      %p58 = por %p56, %p57
      %s59 = ssub.s32 %s18, %s30
      %p60 = scmp.eq.s32.totalorder %s59, 0
      %s62 = sadd.s32 %s61, 1
      %s63 = scalar_select %p60, %s61, %s62
      %p66 = pneg %p60
      %p67 = scmp.eq.s32.totalorder %s11, 1
      %p68 = por %p66, %p67
      %p69 = scmp.ne.s32.totalorder %s61, %s64
      %p70 = scmp.eq.s32.totalorder %s11, 0
      %p71 = por %p69, %p70
      %p72 = scmp.ne.s32.totalorder %s61, %s64
      %p73 = scmp.eq.s32.totalorder %s16, 1
      %p74 = por %p72, %p73
      %p75 = scmp.ne.s32.totalorder %s64, %s65
      %p76 = scmp.eq.s32.totalorder %s16, 0
      %p77 = por %p75, %p76
      %p78 = scmp.ne.s32.totalorder %s64, %s65
      %p79 = scmp.eq.s32.totalorder %s17, 1
      %p80 = por %p78, %p79
      %p82 = scmp.ne.s32.totalorder %s65, %s81
      %p83 = scmp.eq.s32.totalorder %s17, 0
      %p84 = por %p82, %p83
      %s85 = ssub.s32 %s18, %s30
      %s86 = ssub.s32 %s19, %s26
      %s87 = sor.u32 %s85, %s86
      %p88 = scmp.eq.s32.totalorder %s87, 0
      %s90 = sadd.s32 %s89, 1
      %s91 = scalar_select %p88, %s89, %s90
      %p94 = pneg %p88
      %p95 = scmp.eq.s32.totalorder %s11, 1
      %p96 = por %p94, %p95
      %p97 = scmp.ne.s32.totalorder %s89, %s92
      %p98 = scmp.eq.s32.totalorder %s11, 0
      %p99 = por %p97, %p98
      %p100 = scmp.ne.s32.totalorder %s89, %s92
      %p101 = scmp.eq.s32.totalorder %s16, 1
      %p102 = por %p100, %p101
      %p103 = scmp.ne.s32.totalorder %s92, %s93
      %p104 = scmp.eq.s32.totalorder %s16, 0
      %p105 = por %p103, %p104
      %p106 = scmp.ne.s32.totalorder %s92, %s93
      %p107 = scmp.eq.s32.totalorder %s17, 1
      %p108 = por %p106, %p107
      %p110 = scmp.ne.s32.totalorder %s93, %s109
      %p111 = scmp.eq.s32.totalorder %s17, 0
      %p112 = por %p110, %p111
      %p113 = scmp.le.s32.totalorder 1, %s11
      %p114 = scmp.lt.s32.totalorder %s11, 3
      %p115 = pnand %p113, %p114
      %p116 = pneg %p115
      // Predicated region
      $region9: #{tpu_custom_call.1} parent=5 // pred_check
        _
      $region10: #{tpu_custom_call.1} parent=5 // pred_check_branch
        %118 = sbr.rel (%p115) target = $region12
      $region11: #{tpu_custom_call.1} parent=5 // pred_region
        %s119 = ssub.s32 %s11, 1
      $region12: #{tpu_custom_call.1} parent=5 // pred_fallthru
        _
      %p120 = scmp.lt.s32.totalorder %s11, 2
      // Predicated region
      $region13: #{tpu_custom_call.1} parent=5 // pred_check
        %p121 = pneg %p120
      $region14: #{tpu_custom_call.1} parent=5 // pred_check_branch
        %123 = sbr.rel (%p121) target = $region16
      $region15: #{tpu_custom_call.1} parent=5 // pred_region
        // Predicated region
        $region17: #{tpu_custom_call.1} parent=15 // pred_check
          %p124 = pneg %p45
        $region18: #{tpu_custom_call.1} parent=15 // pred_check_branch
          %126 = sbr.rel (%p124) target = $region20
        $region19: #{tpu_custom_call.1} parent=15 // pred_region
          %s127 = smul.u32 2, %s19
          %p128 = scmp.lt.s32.totalorder %s18, 1
          %s129 = scalar_select %p128, %s18, 1
          %p130 = scmp.lt.s32.totalorder %s127, 1
          %s131 = scalar_select %p130, %s127, 1
          %s132 = smul.addr %s129, 2
          %s133 = sadd.s32 %s131, %s132
          %s134 = smul.addr %s133, 2
          %s135 = scalar_lea.vmem %s0, %s134
          %s136 = smul.u32 2, %s19
        $region20: #{tpu_custom_call.1} parent=15 // pred_fallthru
          _
        // Predicated region
        $region21: #{tpu_custom_call.1} parent=15 // pred_check
          %p137 = pneg %p71
        $region22: #{tpu_custom_call.1} parent=15 // pred_check_branch
          %139 = sbr.rel (%p137) target = $region24
        $region23: #{tpu_custom_call.1} parent=15 // pred_region
          %p140 = scmp.lt.s32.totalorder %s18, 1
          %s141 = scalar_select %p140, %s18, 1
          %s142 = smul.addr %s141, 8
          %s143 = smul.addr %s142, 8
          %s144 = scalar_lea.vmem %s1, %s143
        $region24: #{tpu_custom_call.1} parent=15 // pred_fallthru
          _
      $region16: #{tpu_custom_call.1} parent=5 // pred_fallthru
        _
      %p145 = scmp.le.s32.totalorder 1, %s11
      %p146 = scmp.lt.s32.totalorder %s11, 3
      %p147 = pnand %p145, %p146
      %p148 = pneg %p147
      // Predicated region
      $region25: #{tpu_custom_call.1} parent=5 // pred_check
        _
      $region26: #{tpu_custom_call.1} parent=5 // pred_check_branch
        %150 = sbr.rel (%p147) target = $region28
      $region27: #{tpu_custom_call.1} parent=5 // pred_region
        %s151 = ssub.s32 %s11, 1
        %s152 = smul.u32 2, %s21
        %p153 = scmp.lt.s32.totalorder %s20, 1
        %s154 = scalar_select %p153, %s20, 1
        %p155 = scmp.lt.s32.totalorder %s152, 1
        %s156 = scalar_select %p155, %s152, 1
        %s157 = smul.addr %s154, 2
        %s158 = sadd.s32 %s156, %s157
        %s159 = smul.addr %s158, 2
        %s160 = scalar_lea.vmem %s0, %s159
        %p161 = pneg %p51
        %p162 = pneg %p48
        %p163 = scmp.lt.s32.totalorder %s20, 1
        %s164 = scalar_select %p163, %s20, 1
        %s165 = smul.addr %s164, 8
        %s166 = smul.addr %s165, 8
        %s167 = scalar_lea.vmem %s1, %s166
        %p168 = pneg %p77
        %p169 = pneg %p74
        %p170 = pneg %p105
        %p171 = pneg %p102
        %s172 = sand.u32 %s92, 1
        %s173 = scalar_lea.sflag [#allocation3], %s172
        %s174 = sand.u32 %s92, 1
        %s175 = smul.addr %s174, 8
        %s176 = scalar_lea.vmem [#allocation2], %s175
        %s177 = smul.u32 2, %s21
        %p178 = scmp.lt.s32.totalorder %s20, 1
        %s179 = scalar_select %p178, %s20, 1
        %p180 = scmp.lt.s32.totalorder %s177, 1
        %s181 = scalar_select %p180, %s177, 1
        %s182 = smul.addr %s179, 2
        %s183 = sadd.s32 %s181, %s182
        %s184 = smul.addr %s183, 2
        %s185 = scalar_lea.vmem %s0, %s184
        %s186 = smul.u32 2, %s21
        %p187 = scmp.lt.s32.totalorder %s20, 1
        %s188 = scalar_select %p187, %s20, 1
        %s189 = smul.addr %s188, 8
        %s190 = smul.addr %s189, 8
        %s191 = scalar_lea.vmem %s1, %s190
        %s192 = smul.u32 2, %s21
        %s193 = smul.u32 %s21, 256
        %v194 = vlaneseq
        %v195 = vand.u32 %v194, 127
        %v196 = vadd.s32 %v195, 128
        %v197 = vstv %s193
        %v198 = vadd.s32 %v197, %v195
        %v199 = vadd.s32 %v197, %v196
        %v200 = vcvt.s32.f32 %v198
        %v201 = vcvt.s32.f32 %v199
        %v202 = vadd.f32 %v200, 0.5
        %v203 = vadd.f32 %v201, 0.5
        %v204 = vrcp.pop 16.0
        %v205 = vmul.f32 %v202, %v204
        %v206 = vmul.f32 %v203, %v204
        %v207 = vfloor.f32 %v205
        %v208 = vfloor.f32 %v206
        %v209 = vmul.f32 %v207, 16.0
        %v210 = vmul.f32 %v208, 16.0
        %v211 = vsub.f32 %v200, %v209
        %v212 = vsub.f32 %v201, %v210
        %v213 = vld [vmem:[%s185] sm:$0xf]
        %v215 = vlaneseq
        %v216 = vshrl.u32 %v215, 7
        %v217 = vsub.s32 0, %v216
        %v218 = vrot.slane %v213, %v217
        %v219 = vlaneseq
        %v220 = vshrl.u32 %v219, 7
        %v221 = vsub.s32 2, %v220
        %v222 = vrot.slane %v213, %v221
        %v225 = vadd.f32 %v207, %v218
        %v226 = vadd.f32 %v208, %v222
        %v227 = vlaneseq
        %v228 = vshrl.u32 %v227, 7
        %v229 = vsub.s32 1, %v228
        %v230 = vrot.slane %v213, %v229
        %v231 = vlaneseq
        %v232 = vshrl.u32 %v231, 7
        %v233 = vsub.s32 3, %v232
        %v234 = vrot.slane %v213, %v233
        %v237 = vadd.f32 %v211, %v230
        %v238 = vadd.f32 %v212, %v234
        %v239 = vlaneseq
        %v240 = vshrl.u32 %v239, 7
        %v241 = vadd.s32 %v240, 8
        %v242 = vcvt.s32.f32 %v240
        %v243 = vcvt.s32.f32 %v241
        %v244 = vlaneseq
        %v245 = vshrl.u32 %v244, 7
        %v246 = vsub.s32 0, %v245
        %v247 = vrot.slane %v237, %v246
        %v248 = vlaneseq
        %v249 = vshrl.u32 %v248, 7
        %v250 = vsub.s32 0, %v249
        %v251 = vrot.slane %v238, %v250
        %v252 = vsub.f32 %v242, %v247
        %v253 = vsub.f32 %v242, %v251
        %v254 = vsub.f32 %v243, %v247
        %v255 = vsub.f32 %v243, %v251
        %v256 = vand.u32 2147483647, %v252
        %v257 = vand.u32 2147483647, %v253
        %v258 = vand.u32 2147483647, %v254
        %v259 = vand.u32 2147483647, %v255
        %v260 = vsub.f32 1.0, %v256
        %v261 = vsub.f32 1.0, %v257
        %v262 = vsub.f32 1.0, %v258
        %v263 = vsub.f32 1.0, %v259
        %v264 = vmax.f32 %v260, 0.0
        %v265 = vmax.f32 %v261, 0.0
        %v266 = vmax.f32 %v262, 0.0
        %v267 = vmax.f32 %v263, 0.0
        %v268 = vlaneseq
        %v269 = vshrl.u32 %v268, 7
        %v270 = vsub.s32 0, %v269
        %v271 = vrot.slane %v225, %v270
        %v272 = vlaneseq
        %v273 = vshrl.u32 %v272, 7
        %v274 = vsub.s32 0, %v273
        %v275 = vrot.slane %v226, %v274
        %v276 = vsub.f32 %v242, %v271
        %v277 = vsub.f32 %v242, %v275
        %v278 = vsub.f32 %v243, %v271
        %v279 = vsub.f32 %v243, %v275
        %v280 = vand.u32 2147483647, %v276
        %v281 = vand.u32 2147483647, %v277
        %v282 = vand.u32 2147483647, %v278
        %v283 = vand.u32 2147483647, %v279
        %v284 = vsub.f32 1.0, %v280
        %v285 = vsub.f32 1.0, %v281
        %v286 = vsub.f32 1.0, %v282
        %v287 = vsub.f32 1.0, %v283
        %v288 = vmax.f32 %v284, 0.0
        %v289 = vmax.f32 %v285, 0.0
        %v290 = vmax.f32 %v286, 0.0
        %v291 = vmax.f32 %v287, 0.0
        %v292 = vld [vmem:[%s191] sm:$0xff]
        %v293 = vld [vmem:[%s191 + $0x8] sm:$0xff]
        %v294 = vld [vmem:[%s191 + $0x10] sm:$0xff]
        %v295 = vld [vmem:[%s191 + $0x18] sm:$0xff]
        %v296 = vld [vmem:[%s191 + $0x20] sm:$0xff]
        %v297 = vld [vmem:[%s191 + $0x28] sm:$0xff]
        %v298 = vld [vmem:[%s191 + $0x30] sm:$0xff]
        %v299 = vld [vmem:[%s191 + $0x38] sm:$0xff]
        %vm300 = vcmask 130048
        %v302 = vsel %vm300, %v292, 0
        %v305 = vsel %vm300, %v293, 0
        %v308 = vsel %vm300, %v294, 0
        %v311 = vsel %vm300, %v295, 0
        %v314 = vsel %vm300, %v296, 0
        %v317 = vsel %vm300, %v297, 0
        %v320 = vsel %vm300, %v298, 0
        %v323 = vsel %vm300, %v299, 0
        %325 = vmatprep.subr.mxu0 0.0
        %326 = vmatpush1.msra.mxu0 0.0
        %327 = vmatprep.subr.mxu0 0.0
        %328 = vmatpush1.msra.mxu0 0.0
        %329 = vmatprep.subr.mxu0 0.0
        %330 = vmatpush1.msra.mxu0 0.0
        %331 = vmatprep.subr.mxu0 0.0
        %332 = vmatpush1.msra.mxu0 0.0
        %333 = vmatprep.subr.mxu0 0.0
        %334 = vmatpush1.msra.mxu0 0.0
        %335 = vmatprep.subr.mxu0 0.0
        %336 = vmatpush1.msra.mxu0 0.0
        %337 = vmatprep.subr.mxu0 0.0
        %338 = vmatpush1.msra.mxu0 0.0
        %339 = vmatprep.subr.mxu0 0.0
        %340 = vmatpush1.msra.mxu0 0.0
        %341 = vmatprep.subr.mxu0 0.0
        %342 = vmatpush1.msra.mxu0 0.0
        %343 = vmatprep.subr.mxu0 0.0
        %344 = vmatpush1.msra.mxu0 0.0
        %345 = vmatprep.subr.mxu0 0.0
        %346 = vmatpush1.msra.mxu0 0.0
        %347 = vmatprep.subr.mxu0 0.0
        %348 = vmatpush1.msra.mxu0 0.0
        %349 = vmatprep.subr.mxu0 0.0
        %350 = vmatpush1.msra.mxu0 0.0
        %351 = vmatprep.subr.mxu0 0.0
        %352 = vmatpush1.msra.mxu0 0.0
        %353 = vmatprep.subr.mxu0 %v267
        %354 = vmatpush1.msra.mxu0 %v266
        %355 = vmatprep.subr.mxu0 %v265
        %356 = vmatpush1.msra.mxu0 %v264
        %357 = vmatprep.subr.mxu0 0.0
        %358 = vmatpush2.msra.mxu0 0.0
        %359 = vmatprep.subr.mxu0 0.0
        %360 = vmatpush2.msra.mxu0 0.0
        %361 = vmatprep.subr.mxu0 0.0
        %362 = vmatpush2.msra.mxu0 0.0
        %363 = vmatprep.subr.mxu0 0.0
        %364 = vmatpush2.msra.mxu0 0.0
        %365 = vmatprep.subr.mxu0 0.0
        %366 = vmatpush2.msra.mxu0 0.0
        %367 = vmatprep.subr.mxu0 0.0
        %368 = vmatpush2.msra.mxu0 0.0
        %369 = vmatprep.subr.mxu0 0.0
        %370 = vmatpush2.msra.mxu0 0.0
        %371 = vmatprep.subr.mxu0 0.0
        %372 = vmatpush2.msra.mxu0 0.0
        %373 = vmatprep.subr.mxu0 0.0
        %374 = vmatpush2.msra.mxu0 0.0
        %375 = vmatprep.subr.mxu0 0.0
        %376 = vmatpush2.msra.mxu0 0.0
        %377 = vmatprep.subr.mxu0 0.0
        %378 = vmatpush2.msra.mxu0 0.0
        %379 = vmatprep.subr.mxu0 0.0
        %380 = vmatpush2.msra.mxu0 0.0
        %381 = vmatprep.subr.mxu0 0.0
        %382 = vmatpush2.msra.mxu0 0.0
        %383 = vmatprep.subr.mxu0 0.0
        %384 = vmatpush2.msra.mxu0 0.0
        %385 = vmatprep.subr.mxu0 0.0
        %386 = vmatpush2.msra.mxu0 0.0
        %387 = vmatprep.subr.mxu0 0.0
        %388 = vmatpush2.msra.mxu0 0.0
        %389 = vmatprep.mubr.f32.mxu0 0.0
        %390 = vmatmul.mubr.f32.gmra.mxu0 %v302
        %v391 = vpop.f32.mrf.mxu0
        %v392 = vadd.f32 0.0, %v391
        %v393 = vpop.f32.mrf.mxu0
        %v394 = vadd.f32 0.0, %v393
        %395 = vmatprep.mubr.f32.mxu0 0.0
        %396 = vmatmul.mubr.f32.gmra.mxu0 %v305
        %v397 = vpop.f32.mrf.mxu0
        %v398 = vadd.f32 0.0, %v397
        %v399 = vpop.f32.mrf.mxu0
        %v400 = vadd.f32 0.0, %v399
        %401 = vmatprep.mubr.f32.mxu0 0.0
        %402 = vmatmul.mubr.f32.gmra.mxu0 %v308
        %v403 = vpop.f32.mrf.mxu0
        %v404 = vadd.f32 0.0, %v403
        %v405 = vpop.f32.mrf.mxu0
        %v406 = vadd.f32 0.0, %v405
        %407 = vmatprep.mubr.f32.mxu0 0.0
        %408 = vmatmul.mubr.f32.gmra.mxu0 %v311
        %v409 = vpop.f32.mrf.mxu0
        %v410 = vadd.f32 0.0, %v409
        %v411 = vpop.f32.mrf.mxu0
        %v412 = vadd.f32 0.0, %v411
        %413 = vmatprep.mubr.f32.mxu0 0.0
        %414 = vmatmul.mubr.f32.gmra.mxu0 %v314
        %v415 = vpop.f32.mrf.mxu0
        %v416 = vadd.f32 0.0, %v415
        %v417 = vpop.f32.mrf.mxu0
        %v418 = vadd.f32 0.0, %v417
        %419 = vmatprep.mubr.f32.mxu0 0.0
        %420 = vmatmul.mubr.f32.gmra.mxu0 %v317
        %v421 = vpop.f32.mrf.mxu0
        %v422 = vadd.f32 0.0, %v421
        %v423 = vpop.f32.mrf.mxu0
        %v424 = vadd.f32 0.0, %v423
        %425 = vmatprep.mubr.f32.mxu0 0.0
        %426 = vmatmul.mubr.f32.gmra.mxu0 %v320
        %v427 = vpop.f32.mrf.mxu0
        %v428 = vadd.f32 0.0, %v427
        %v429 = vpop.f32.mrf.mxu0
        %v430 = vadd.f32 0.0, %v429
        %431 = vmatprep.mubr.f32.mxu0 0.0
        %432 = vmatmul.mubr.f32.gmra.mxu0 %v323
        %v433 = vpop.f32.mrf.mxu0
        %v434 = vadd.f32 0.0, %v433
        %v435 = vpop.f32.mrf.mxu0
        %v436 = vadd.f32 0.0, %v435
        %437 = vdwg.mxu0
        %v438 = vmul.f32 %v392, %v288
        %v439 = vmul.f32 %v394, %v289
        %v440 = vmul.f32 %v398, %v290
        %v441 = vmul.f32 %v400, %v291
        %v442 = vmul.f32 %v404, %v288
        %v443 = vmul.f32 %v406, %v289
        %v444 = vmul.f32 %v410, %v290
        %v445 = vmul.f32 %v412, %v291
        %v446 = vmul.f32 %v416, %v288
        %v447 = vmul.f32 %v418, %v289
        %v448 = vmul.f32 %v422, %v290
        %v449 = vmul.f32 %v424, %v291
        %v450 = vmul.f32 %v428, %v288
        %v451 = vmul.f32 %v430, %v289
        %v452 = vmul.f32 %v434, %v290
        %v453 = vmul.f32 %v436, %v291
        %v454 = vadd.f32 %v438, %v440
        %v455 = vrot.slane %v454, 4
        %v456 = vadd.f32 %v454, %v455
        %v457 = vrot.slane %v456, 2
        %v458 = vadd.f32 %v456, %v457
        %v459 = vrot.slane %v458, 1
        %v460 = vadd.f32 %v458, %v459
        %v461 = vadd.f32 %v439, %v441
        %v462 = vrot.slane %v461, 4
        %v463 = vadd.f32 %v461, %v462
        %v464 = vrot.slane %v463, 2
        %v465 = vadd.f32 %v463, %v464
        %v466 = vrot.slane %v465, 1
        %v467 = vadd.f32 %v465, %v466
        %v468 = vadd.f32 %v442, %v444
        %v469 = vrot.slane %v468, 4
        %v470 = vadd.f32 %v468, %v469
        %v471 = vrot.slane %v470, 2
        %v472 = vadd.f32 %v470, %v471
        %v473 = vrot.slane %v472, 1
        %v474 = vadd.f32 %v472, %v473
        %v475 = vadd.f32 %v443, %v445
        %v476 = vrot.slane %v475, 4
        %v477 = vadd.f32 %v475, %v476
        %v478 = vrot.slane %v477, 2
        %v479 = vadd.f32 %v477, %v478
        %v480 = vrot.slane %v479, 1
        %v481 = vadd.f32 %v479, %v480
        %v482 = vadd.f32 %v446, %v448
        %v483 = vrot.slane %v482, 4
        %v484 = vadd.f32 %v482, %v483
        %v485 = vrot.slane %v484, 2
        %v486 = vadd.f32 %v484, %v485
        %v487 = vrot.slane %v486, 1
        %v488 = vadd.f32 %v486, %v487
        %v489 = vadd.f32 %v447, %v449
        %v490 = vrot.slane %v489, 4
        %v491 = vadd.f32 %v489, %v490
        %v492 = vrot.slane %v491, 2
        %v493 = vadd.f32 %v491, %v492
        %v494 = vrot.slane %v493, 1
        %v495 = vadd.f32 %v493, %v494
        %v496 = vadd.f32 %v450, %v452
        %v497 = vrot.slane %v496, 4
        %v498 = vadd.f32 %v496, %v497
        %v499 = vrot.slane %v498, 2
        %v500 = vadd.f32 %v498, %v499
        %v501 = vrot.slane %v500, 1
        %v502 = vadd.f32 %v500, %v501
        %v503 = vadd.f32 %v451, %v453
        %v504 = vrot.slane %v503, 4
        %v505 = vadd.f32 %v503, %v504
        %v506 = vrot.slane %v505, 2
        %v507 = vadd.f32 %v505, %v506
        %v508 = vrot.slane %v507, 1
        %v509 = vadd.f32 %v507, %v508
        %v518 = vcombine.low %v460, %v467
        %v519 = vcombine.low %v474, %v481
        %v520 = vcombine.low %v488, %v495
        %v521 = vcombine.low %v502, %v509
        %v522 = vrot.slane %v519, 7
        %vm523 = vcmask 1041409
        %v524 = vsel %vm523, %v522, %v518
        %vm525 = vcmask 1045509
        %v526 = vsel %vm525, %v522, %v524
        %v527 = vrot.slane %v520, 6
        %vm528 = vcmask 1042434
        %v529 = vsel %vm528, %v527, %v526
        %vm530 = vcmask 1046534
        %v531 = vsel %vm530, %v527, %v529
        %v532 = vrot.slane %v521, 5
        %vm533 = vcmask 1043459
        %v534 = vsel %vm533, %v532, %v531
        %vm535 = vcmask 1047559
        %v536 = vsel %vm535, %v532, %v534
        %538 = vst [vmem:[%s176] sm:$0xff] %v536
        %s539 = sand.u32 %s92, 1
        %s540 = scalar_lea.sflag [#allocation3], %s539
        %s541 = sand.u32 %s92, 1
        %s542 = smul.addr %s541, 8
        %s543 = scalar_lea.vmem [#allocation2], %s542
        // Predicated region
        $region29: #{tpu_custom_call.1} parent=27 // pred_check
          %p544 = pneg %p102
        $region30: #{tpu_custom_call.1} parent=27 // pred_check_branch
          %546 = sbr.rel (%p544) target = $region32
        $region31: #{tpu_custom_call.1} parent=27 // pred_region
          %s547 = smul.u32 2, %s21
          %s549 = ssub.s32 128, 128
          %550 = vsyncadd %s540, %s549
          %s551 = smul.addr %s20, 2
          %s552 = sadd.s32 %s547, %s551
          %s553 = smul.addr %s552, 64
          %s554 = scalar_lea.hbm %s2, %s553
          %s556 = sshll.u32 %s543, 4
          %s557 = int_to_ptr.vmem [resolvable:$true] %s556
          %559 = dma.vmem_to_hbm [thread:$0]  %s557, 128, %s554, %s540
        $region32: #{tpu_custom_call.1} parent=27 // pred_fallthru
          _
      $region28: #{tpu_custom_call.1} parent=5 // pred_fallthru
        _
      %p560 = scmp.le.s32.totalorder 2, %s11
      // Predicated region
      $region33: #{tpu_custom_call.1} parent=5 // pred_check
        %p561 = pneg %p560
      $region34: #{tpu_custom_call.1} parent=5 // pred_check_branch
        %563 = sbr.rel (%p561) target = $region36
      $region35: #{tpu_custom_call.1} parent=5 // pred_region
        %s564 = ssub.s32 %s11, 2
        // Predicated region
        $region37: #{tpu_custom_call.1} parent=35 // pred_check
          %p565 = pneg %p108
        $region38: #{tpu_custom_call.1} parent=35 // pred_check_branch
          %567 = sbr.rel (%p565) target = $region40
        $region39: #{tpu_custom_call.1} parent=35 // pred_region
          %s568 = sand.u32 %s93, 1
          %s569 = scalar_lea.sflag [#allocation3], %s568
          %s570 = sand.u32 %s93, 1
          %s571 = smul.addr %s570, 8
          %s572 = scalar_lea.vmem [#allocation2], %s571
          %573 = dma.done %s569, 128
        $region40: #{tpu_custom_call.1} parent=35 // pred_fallthru
          _
      $region36: #{tpu_custom_call.1} parent=5 // pred_fallthru
        _
    $region6: #{tpu_custom_call.1} parent=1 // loop_footer
      %s15 = sadd.s32 1, %s11
    $region7: #{tpu_custom_call.1} parent=1 // loop_footer_branch
      %10 = sbr.rel target = $region3
    $region8: #{tpu_custom_call.1} parent=1 // loop_exit
      _
    %574 = vsyncpa [#allocation3], 1
    %s575 = scalar_lea.sflag [#allocation3], 1
    %576 = vsyncpa %s575, 1

</llo_original>
